<compile_context>
chip_gen: v5e
topology: v5e:2x2
jax: 0.10.0
libtpu: 0.0.40
codegen_flags: <defaults>
</compile_context>

<pallas_src>
import functools

import jax
import jax.numpy as jnp
from jax.experimental import pallas as pl
from jax.experimental.pallas import tpu as pltpu


LANE = 128  # every "output-ish" width is zero-padded to a full 128-lane vreg row


def _round_up(x, m):
    return (x + m - 1) // m * m


# --------------------------------------------------------------------------- #
# Fused kernel: conv (as matmul) + ReLU + GAP + Linear/ReLU/Linear/ReLU/Linear #
# --------------------------------------------------------------------------- #
def fused_kernel(patches_ref, wc_ref, bc_ref, w1_ref, b1_ref,
                 w2_ref, b2_ref, w3_ref, b3_ref, o_ref):
    bb, hw, ck = patches_ref.shape
    p = patches_ref[...].reshape(bb * hw, ck)                         # bf16 (bb*hw, ck)

    # synthetic backbone: 3x3 conv lowered to one matmul (bf16 in, f32 acc), ReLU
    conv = jnp.dot(p, wc_ref[...], preferred_element_type=jnp.float32) + bc_ref[...]
    conv = jnp.maximum(conv, 0.0)                                     # f32 (bb*hw, 128)

    # global average pool: sublane reduce over the hw axis (XLU slack; no O(bb^2) work)
    feats = conv.reshape(bb, hw, conv.shape[-1]).sum(axis=1) * (1.0 / hw)   # (bb, 128)

    # MLP head (Dropout p=0 -> identity); all widths lane-padded to 128 (zero pad)
    h = jnp.maximum(jnp.dot(feats, w1_ref[...], preferred_element_type=jnp.float32)
                    + b1_ref[...], 0.0)
    h = jnp.maximum(jnp.dot(h, w2_ref[...], preferred_element_type=jnp.float32)
                    + b2_ref[...], 0.0)
    out = jnp.dot(h, w3_ref[...], preferred_element_type=jnp.float32) + b3_ref[...]
    o_ref[0] = out                                                    # (bb, 128) lane-dense


# --------------------------------------------------------------------------- #
# Generation-aware VMEM budgeting and grid selection                           #
# --------------------------------------------------------------------------- #
@functools.lru_cache(maxsize=None)
def _vmem_capacity_bytes():
    try:
        cap = int(getattr(pltpu.get_tpu_info(), "vmem_capacity_bytes", 0))
    except Exception:
        cap = 0
    if cap <= 0:
        cap = 64 * 1024 * 1024            # conservative default (v7x per-core VMEM)
    return min(cap, 128 * 1024 * 1024)


@functools.lru_cache(maxsize=None)
def _has_two_tensorcores():
    # v7x exposes 2 TensorCores per chip; v5e/v6e have a single TensorCore.
    try:
        return "7" in jax.devices()[0].device_kind
    except Exception:
        return False


def _vmem_plan(hw, ck, f_pad):
    """Return (per_batch_item_bytes, fixed_bytes, budget_bytes)."""
    cap = _vmem_capacity_bytes()
    if _has_two_tensorcores():
        cap = min(cap, 64 * 1024 * 1024)  # v7x VMEM is per-core, not per-chip
    budget = int(cap * 0.7)               # leave headroom for compiler scratch / spills
    ck_vmem = _round_up(ck, LANE)          # a (hw, 36) tile occupies (hw, 128) lanes in VMEM
    per_item = (2 * hw * ck_vmem * 2       # bf16 patches block, double-buffered input
                + hw * f_pad * 4           # f32 conv intermediate
                + 2 * LANE * 4)            # f32 lane-padded output row, double-buffered
    fixed = 2 * (_round_up(ck, 8) * f_pad * 2   # wc (bf16), double-buffered
                 + 3 * LANE * LANE * 4          # w1, w2, w3 (f32)
                 + 4 * 8 * LANE * 4)            # 4 biases, sublane-padded (f32)
    return per_item, fixed, budget


def _pick_batch_block(batch, hw, ck, f_pad):
    per_item, fixed, budget = _vmem_plan(hw, ck, f_pad)
    max_bb = max(1, (budget - fixed) // per_item)
    if batch <= max_bb:
        # Whole batch fits in one grid step.  Split in two only on a 2-TC chip (v7x)
        # and only when each step keeps the MXU busy (>= 512 patch rows per step).
        if _has_two_tensorcores() and batch % 2 == 0 and (batch // 2) * hw >= 512:
            return batch // 2
        return batch                       # single step: no per-step overhead on 1-TC chips
    bb = min(batch, max_bb)
    while batch % bb != 0:
        bb -= 1
    return bb


def run_fused(patches, wc, bc, w1, b1, w2, b2, w3, b3):
    B, HW, CK = patches.shape
    F_PAD = wc.shape[1]
    bb = _pick_batch_block(B, HW, CK, F_PAD)
    nb = B // bb
    _, _, vmem_limit = _vmem_plan(HW, CK, F_PAD)

    out = pl.pallas_call(
        fused_kernel,
        out_shape=jax.ShapeDtypeStruct((nb, bb, LANE), jnp.float32),
        grid=(nb,),
        in_specs=[
            pl.BlockSpec((bb, HW, CK), lambda i: (i, 0, 0)),   # patches (bf16, per batch blk)
            pl.BlockSpec((CK, F_PAD), lambda i: (0, 0)),       # conv weight (bf16)
            pl.BlockSpec((1, F_PAD), lambda i: (0, 0)),        # conv bias
            pl.BlockSpec((F_PAD, LANE), lambda i: (0, 0)),     # head w1
            pl.BlockSpec((1, LANE), lambda i: (0, 0)),         # head b1
            pl.BlockSpec((LANE, LANE), lambda i: (0, 0)),      # head w2 (36 -> 128 pad)
            pl.BlockSpec((1, LANE), lambda i: (0, 0)),         # head b2
            pl.BlockSpec((LANE, LANE), lambda i: (0, 0)),      # head w3 (1 -> 128 pad)
            pl.BlockSpec((1, LANE), lambda i: (0, 0)),         # head b3
        ],
        out_specs=pl.BlockSpec((1, bb, LANE), lambda i: (i, 0, 0)),
        compiler_params=pltpu.CompilerParams(
            dimension_semantics=("parallel",),
            vmem_limit_bytes=int(vmem_limit)),
    )(patches, wc, bc, w1, b1, w2, b2, w3, b3)
    # real scalar output of the head is column 0 of the lane-padded block
    return out.reshape(B, LANE)[:, :1]


# --------------------------------------------------------------------------- #
# Parameter init (deterministic, PyTorch-style uniform(+-1/sqrt(fan_in)))      #
# --------------------------------------------------------------------------- #
def _linear_init(key, fan_in, fan_out):
    kw, kb = jax.random.split(key)
    bound = 1.0 / jnp.sqrt(fan_in)
    w = jax.random.uniform(kw, (fan_in, fan_out), jnp.float32, -bound, bound)
    b = jax.random.uniform(kb, (1, fan_out), jnp.float32, -bound, bound)
    return w, b


def init_params(key, in_channels, num_outputs):
    k_conv, k1, k2, k3 = jax.random.split(key, 4)
    ck = in_channels * 3 * 3
    wc, bc = _linear_init(k_conv, ck, num_outputs)   # conv as (CK, F) matmul weight
    w1, b1 = _linear_init(k1, num_outputs, 128)
    w2, b2 = _linear_init(k2, 128, 36)
    w3, b3 = _linear_init(k3, 36, 1)
    return dict(wc=wc, bc=bc, w1=w1, b1=b1, w2=w2, b2=b2, w3=w3, b3=b3)


def _pad_to(x, rows, cols):
    return jnp.pad(x, ((0, rows - x.shape[0]), (0, cols - x.shape[1])))


def prepare_params(p):
    """One-time parameter preparation (hoisted out of the jitted forward):
    zero-pad every output width to LANE=128 so all kernel matmuls/stores are
    lane-dense, and cast the conv weight to bf16 to match the bf16 patch stream.
    CK (=C*9) is deliberately left unpadded (MXU pads K for free)."""
    ck, f = p["wc"].shape
    f_pad = _round_up(max(f, LANE), LANE)
    return dict(
        wc=_pad_to(p["wc"], ck, f_pad).astype(jnp.bfloat16),
        bc=_pad_to(p["bc"], 1, f_pad),
        w1=_pad_to(p["w1"], f_pad, LANE),
        b1=_pad_to(p["b1"], 1, LANE),
        w2=_pad_to(p["w2"], LANE, LANE),
        b2=_pad_to(p["b2"], 1, LANE),
        w3=_pad_to(p["w3"], LANE, LANE),
        b3=_pad_to(p["b3"], 1, LANE),
    )


# --------------------------------------------------------------------------- #
# Full forward pass                                                            #
# --------------------------------------------------------------------------- #
def extract_patches(x):
    # x: (B, C, H, W) NCHW like PyTorch.  Patches are emitted directly in NHWC
    # order (no wrapper transpose); patch features are flattened as (C, kh, kw).
    B, C, H, W = x.shape
    patches = jax.lax.conv_general_dilated_patches(
        x, filter_shape=(3, 3), window_strides=(1, 1), padding="SAME",
        dimension_numbers=("NCHW", "OIHW", "NHWC"))        # (B, H, W, C*9)
    return patches.reshape(B, H * W, C * 9)


@jax.jit
def regression_adopted_nn_forward(x, prepared_params):
    # The 9x-inflated patches stream is the dominant HBM traffic: keep it bf16
    # (accumulation inside the kernel stays f32).
    patches = extract_patches(x.astype(jnp.bfloat16))      # (B, H*W, C*9) bf16
    pp = prepared_params
    return run_fused(patches, pp["wc"], pp["bc"], pp["w1"], pp["b1"],
                     pp["w2"], pp["b2"], pp["w3"], pp["b3"])   # (B, 1)


def reference_forward(x, params):
    # pure-JAX f32 reference with the unpadded parameters
    patches = extract_patches(x)
    conv = jnp.maximum(
        jnp.einsum("bpk,kf->bpf", patches, params["wc"]) + params["bc"], 0.0)
    feats = conv.mean(axis=1)
    h = jnp.maximum(feats @ params["w1"] + params["b1"], 0.0)
    h = jnp.maximum(h @ params["w2"] + params["b2"], 0.0)
    return h @ params["w3"] + params["b3"]


if __name__ == "__main__":
    key = jax.random.PRNGKey(0)
    k_x, k_p = jax.random.split(key)

    B, C, H, W = 2, 4, 16, 16
    NUM_OUTPUTS = 64  # synthetic backbone feature width (utils.get_num_outputs stand-in)

    x = jax.random.normal(k_x, (B, C, H, W), dtype=jnp.float32)
    params = init_params(k_p, C, NUM_OUTPUTS)
    prepared = prepare_params(params)      # padding / bf16 cast done ONCE, outside jit

    out = regression_adopted_nn_forward(x, prepared)
    out = jax.block_until_ready(out)

    ref = reference_forward(x, params)
    assert out.shape == (B, 1) and out.dtype == jnp.float32
    assert bool(jnp.allclose(out, ref, rtol=2e-2, atol=2e-2)), (
        f"max abs diff {float(jnp.max(jnp.abs(out - ref)))}")
    print("KERNEL_OK")
</pallas_src>

<mosaic_0001>
module attributes {stable_mosaic.version = 11 : i64} {
  func.func @fused_kernel(%arg0: i32, %arg1: memref<2x256x36xbf16, #tpu.memory_space<vmem>>, %arg2: memref<36x128xbf16, #tpu.memory_space<vmem>>, %arg3: memref<1x128xf32, #tpu.memory_space<vmem>>, %arg4: memref<128x128xf32, #tpu.memory_space<vmem>>, %arg5: memref<1x128xf32, #tpu.memory_space<vmem>>, %arg6: memref<128x128xf32, #tpu.memory_space<vmem>>, %arg7: memref<1x128xf32, #tpu.memory_space<vmem>>, %arg8: memref<128x128xf32, #tpu.memory_space<vmem>>, %arg9: memref<1x128xf32, #tpu.memory_space<vmem>>, %arg10: memref<1x2x128xf32, #tpu.memory_space<vmem>>) attributes {dimension_semantics = [#tpu.dimension_semantics<parallel>], iteration_bounds = array<i64: 1>, scalar_prefetch = 0 : i64, scratch_operands = 0 : i64, tpu.core_type = #tpu.core_type<tc>, window_params = [{transform_indices = @transform_0, window_bounds = array<i64: 2, 256, 36>}, {pipeline_mode = #tpu.pipeline_mode<synchronous>, transform_indices = @transform_1, window_bounds = array<i64: 36, 128>}, {pipeline_mode = #tpu.pipeline_mode<synchronous>, transform_indices = @transform_2, window_bounds = array<i64: 1, 128>}, {pipeline_mode = #tpu.pipeline_mode<synchronous>, transform_indices = @transform_3, window_bounds = array<i64: 128, 128>}, {pipeline_mode = #tpu.pipeline_mode<synchronous>, transform_indices = @transform_4, window_bounds = array<i64: 1, 128>}, {pipeline_mode = #tpu.pipeline_mode<synchronous>, transform_indices = @transform_5, window_bounds = array<i64: 128, 128>}, {pipeline_mode = #tpu.pipeline_mode<synchronous>, transform_indices = @transform_6, window_bounds = array<i64: 1, 128>}, {pipeline_mode = #tpu.pipeline_mode<synchronous>, transform_indices = @transform_7, window_bounds = array<i64: 128, 128>}, {pipeline_mode = #tpu.pipeline_mode<synchronous>, transform_indices = @transform_8, window_bounds = array<i64: 1, 128>}, {transform_indices = @transform_9, window_bounds = array<i64: 1, 2, 128>}]} {
    %c0 = arith.constant 0 : index
    %c0_0 = arith.constant 0 : index
    %c0_1 = arith.constant 0 : index
    %0 = vector.load %arg1[%c0, %c0_0, %c0_1] : memref<2x256x36xbf16, #tpu.memory_space<vmem>>, vector<2x256x36xbf16>
    %1 = vector.shape_cast %0 : vector<2x256x36xbf16> to vector<512x36xbf16>
    %c0_2 = arith.constant 0 : index
    %c0_3 = arith.constant 0 : index
    %2 = vector.load %arg2[%c0_2, %c0_3] : memref<36x128xbf16, #tpu.memory_space<vmem>>, vector<36x128xbf16>
    %cst = arith.constant dense<0.000000e+00> : vector<512x128xf32>
    %3 = tpu.matmul %1, %2, %cst {dimension_numbers = #tpu.dot_dimension_numbers<[1], [0], [0], [1], [0, 0, 1, 1], [], []>} : vector<512x36xbf16>, vector<36x128xbf16>, vector<512x128xf32> -> vector<512x128xf32>
    %c0_4 = arith.constant 0 : index
    %c0_5 = arith.constant 0 : index
    %4 = vector.load %arg3[%c0_4, %c0_5] : memref<1x128xf32, #tpu.memory_space<vmem>>, vector<1x128xf32>
    %5 = vector.broadcast %4 : vector<1x128xf32> to vector<512x128xf32>
    %6 = arith.addf %3, %5 : vector<512x128xf32>
    %cst_6 = arith.constant 0.000000e+00 : f32
    %7 = vector.broadcast %cst_6 : f32 to vector<512x128xf32>
    %8 = arith.maximumf %6, %7 : vector<512x128xf32>
    %9 = vector.shape_cast %8 : vector<512x128xf32> to vector<2x256x128xf32>
    %cst_7 = arith.constant dense<0.000000e+00> : vector<2x128xf32>
    %10 = vector.multi_reduction <add>, %9, %cst_7 [1] : vector<2x256x128xf32> to vector<2x128xf32>
    %cst_8 = arith.constant 3.906250e-03 : f32
    %11 = vector.broadcast %cst_8 : f32 to vector<2x128xf32>
    %12 = arith.mulf %10, %11 : vector<2x128xf32>
    %c0_9 = arith.constant 0 : index
    %c0_10 = arith.constant 0 : index
    %13 = vector.load %arg4[%c0_9, %c0_10] : memref<128x128xf32, #tpu.memory_space<vmem>>, vector<128x128xf32>
    %cst_11 = arith.constant dense<0.000000e+00> : vector<2x128xf32>
    %14 = tpu.matmul %12, %13, %cst_11 {dimension_numbers = #tpu.dot_dimension_numbers<[1], [0], [0], [1], [0, 0, 1, 1], [], []>} : vector<2x128xf32>, vector<128x128xf32>, vector<2x128xf32> -> vector<2x128xf32>
    %c0_12 = arith.constant 0 : index
    %c0_13 = arith.constant 0 : index
    %15 = vector.load %arg5[%c0_12, %c0_13] : memref<1x128xf32, #tpu.memory_space<vmem>>, vector<1x128xf32>
    %16 = vector.broadcast %15 : vector<1x128xf32> to vector<2x128xf32>
    %17 = arith.addf %14, %16 : vector<2x128xf32>
    %cst_14 = arith.constant 0.000000e+00 : f32
    %18 = vector.broadcast %cst_14 : f32 to vector<2x128xf32>
    %19 = arith.maximumf %17, %18 : vector<2x128xf32>
    %c0_15 = arith.constant 0 : index
    %c0_16 = arith.constant 0 : index
    %20 = vector.load %arg6[%c0_15, %c0_16] : memref<128x128xf32, #tpu.memory_space<vmem>>, vector<128x128xf32>
    %cst_17 = arith.constant dense<0.000000e+00> : vector<2x128xf32>
    %21 = tpu.matmul %19, %20, %cst_17 {dimension_numbers = #tpu.dot_dimension_numbers<[1], [0], [0], [1], [0, 0, 1, 1], [], []>} : vector<2x128xf32>, vector<128x128xf32>, vector<2x128xf32> -> vector<2x128xf32>
    %c0_18 = arith.constant 0 : index
    %c0_19 = arith.constant 0 : index
    %22 = vector.load %arg7[%c0_18, %c0_19] : memref<1x128xf32, #tpu.memory_space<vmem>>, vector<1x128xf32>
    %23 = vector.broadcast %22 : vector<1x128xf32> to vector<2x128xf32>
    %24 = arith.addf %21, %23 : vector<2x128xf32>
    %cst_20 = arith.constant 0.000000e+00 : f32
    %25 = vector.broadcast %cst_20 : f32 to vector<2x128xf32>
    %26 = arith.maximumf %24, %25 : vector<2x128xf32>
    %c0_21 = arith.constant 0 : index
    %c0_22 = arith.constant 0 : index
    %27 = vector.load %arg8[%c0_21, %c0_22] : memref<128x128xf32, #tpu.memory_space<vmem>>, vector<128x128xf32>
    %cst_23 = arith.constant dense<0.000000e+00> : vector<2x128xf32>
    %28 = tpu.matmul %26, %27, %cst_23 {dimension_numbers = #tpu.dot_dimension_numbers<[1], [0], [0], [1], [0, 0, 1, 1], [], []>} : vector<2x128xf32>, vector<128x128xf32>, vector<2x128xf32> -> vector<2x128xf32>
    %c0_24 = arith.constant 0 : index
    %c0_25 = arith.constant 0 : index
    %29 = vector.load %arg9[%c0_24, %c0_25] : memref<1x128xf32, #tpu.memory_space<vmem>>, vector<1x128xf32>
    %30 = vector.broadcast %29 : vector<1x128xf32> to vector<2x128xf32>
    %31 = arith.addf %28, %30 : vector<2x128xf32>
    %c0_26 = arith.constant 0 : index
    %c0_27 = arith.constant 0 : index
    %c0_28 = arith.constant 0 : index
    %32 = vector.load %arg10[%c0_26, %c0_27, %c0_28] : memref<1x2x128xf32, #tpu.memory_space<vmem>>, vector<1x2x128xf32>
    %33 = vector.shape_cast %32 : vector<1x2x128xf32> to vector<2x128xf32>
    %34 = vector.shape_cast %31 : vector<2x128xf32> to vector<1x2x128xf32>
    tpu.vector_store %arg10[%c0_26, %c0_27, %c0_28], %34 {strides = array<i32>} : memref<1x2x128xf32, #tpu.memory_space<vmem>>, vector<1x2x128xf32>,
    return
  }
  func.func @transform_0(%arg0: i32) -> (i32, i32, i32) {
    %c0_i32 = arith.constant 0 : i32
    %c0_i32_0 = arith.constant 0 : i32
    %c0_i32_1 = arith.constant 0 : i32
    return %arg0, %c0_i32, %c0_i32_0 : i32, i32, i32
  }
  func.func @transform_1(%arg0: i32) -> (i32, i32) {
    %c0_i32 = arith.constant 0 : i32
    %c0_i32_0 = arith.constant 0 : i32
    %c0_i32_1 = arith.constant 0 : i32
    return %c0_i32, %c0_i32_0 : i32, i32
  }
  func.func @transform_2(%arg0: i32) -> (i32, i32) {
    %c0_i32 = arith.constant 0 : i32
    %c0_i32_0 = arith.constant 0 : i32
    %c0_i32_1 = arith.constant 0 : i32
    return %c0_i32, %c0_i32_0 : i32, i32
  }
  func.func @transform_3(%arg0: i32) -> (i32, i32) {
    %c0_i32 = arith.constant 0 : i32
    %c0_i32_0 = arith.constant 0 : i32
    %c0_i32_1 = arith.constant 0 : i32
    return %c0_i32, %c0_i32_0 : i32, i32
  }
  func.func @transform_4(%arg0: i32) -> (i32, i32) {
    %c0_i32 = arith.constant 0 : i32
    %c0_i32_0 = arith.constant 0 : i32
    %c0_i32_1 = arith.constant 0 : i32
    return %c0_i32, %c0_i32_0 : i32, i32
  }
  func.func @transform_5(%arg0: i32) -> (i32, i32) {
    %c0_i32 = arith.constant 0 : i32
    %c0_i32_0 = arith.constant 0 : i32
    %c0_i32_1 = arith.constant 0 : i32
    return %c0_i32, %c0_i32_0 : i32, i32
  }
  func.func @transform_6(%arg0: i32) -> (i32, i32) {
    %c0_i32 = arith.constant 0 : i32
    %c0_i32_0 = arith.constant 0 : i32
    %c0_i32_1 = arith.constant 0 : i32
    return %c0_i32, %c0_i32_0 : i32, i32
  }
  func.func @transform_7(%arg0: i32) -> (i32, i32) {
    %c0_i32 = arith.constant 0 : i32
    %c0_i32_0 = arith.constant 0 : i32
    %c0_i32_1 = arith.constant 0 : i32
    return %c0_i32, %c0_i32_0 : i32, i32
  }
  func.func @transform_8(%arg0: i32) -> (i32, i32) {
    %c0_i32 = arith.constant 0 : i32
    %c0_i32_0 = arith.constant 0 : i32
    %c0_i32_1 = arith.constant 0 : i32
    return %c0_i32, %c0_i32_0 : i32, i32
  }
  func.func @transform_9(%arg0: i32) -> (i32, i32, i32) {
    %c0_i32 = arith.constant 0 : i32
    %c0_i32_0 = arith.constant 0 : i32
    %c0_i32_1 = arith.constant 0 : i32
    return %arg0, %c0_i32, %c0_i32_0 : i32, i32, i32
  }
}

</mosaic_0001>

<llo_original>
// kernel: regression_adopted_nn_forward.1
$region0: #{regression_adopted_nn_forward.1}
  #allocation0 [shape = 'u32[]', space=smem, size = 0x4, offset = 0x4, fixed_abs, tag = 'smem constant byte address 0x4 - core index']
  #allocation1 [shape = 'u32[72,128]{1,0:T(1,128)}', space=vmem, size = 0x9000, scoped, tag = 'internal scratch']
  %s0 = inlined_call_operand.vmem [shape: bf16[2,256,36], index: 0, kind: input, shape index: {}]
  %s1 = inlined_call_operand.vmem [shape: bf16[36,128], index: 1, kind: input, shape index: {}]
  %s2 = inlined_call_operand.vmem [shape: f32[1,128], index: 2, kind: input, shape index: {}]
  %s3 = inlined_call_operand.vmem [shape: f32[128,128], index: 3, kind: input, shape index: {}]
  %s4 = inlined_call_operand.vmem [shape: f32[1,128], index: 4, kind: input, shape index: {}]
  %s5 = inlined_call_operand.vmem [shape: f32[128,128], index: 5, kind: input, shape index: {}]
  %s6 = inlined_call_operand.vmem [shape: f32[1,128], index: 6, kind: input, shape index: {}]
  %s7 = inlined_call_operand.vmem [shape: f32[128,128], index: 7, kind: input, shape index: {}]
  %s8 = inlined_call_operand.vmem [shape: f32[1,128], index: 8, kind: input, shape index: {}]
  %s9 = inlined_call_operand.vmem [shape: f32[1,2,128], index: 9, kind: output, shape index: {}]
  %s10 = sld [smem:[#allocation0]]
  $region46: #{regression_adopted_nn_forward.1} parent=0
    _
  %s12 = ssub.s32 1, %s10
  %s13 = scalar_select 0, %s12, %s10
  // Predicated region
  $region2: #{regression_adopted_nn_forward.1} parent=0 // pred_check
    _
  $region3: #{regression_adopted_nn_forward.1} parent=0 // pred_check_branch
    %15 = sbr.rel (0) target = $region5
  $region4: #{regression_adopted_nn_forward.1} parent=0 // pred_region
    _
  $region5: #{regression_adopted_nn_forward.1} parent=0 // pred_fallthru
    _
  // Predicated region
  $region6: #{regression_adopted_nn_forward.1} parent=0 // pred_check
    _
  $region7: #{regression_adopted_nn_forward.1} parent=0 // pred_check_branch
    %17 = sbr.rel (0) target = $region9
  $region8: #{regression_adopted_nn_forward.1} parent=0 // pred_region
    _
  $region9: #{regression_adopted_nn_forward.1} parent=0 // pred_fallthru
    _
  // Predicated region
  $region10: #{regression_adopted_nn_forward.1} parent=0 // pred_check
    _
  $region11: #{regression_adopted_nn_forward.1} parent=0 // pred_check_branch
    %19 = sbr.rel (0) target = $region13
  $region12: #{regression_adopted_nn_forward.1} parent=0 // pred_region
    _
  $region13: #{regression_adopted_nn_forward.1} parent=0 // pred_fallthru
    _
  // Predicated region
  $region14: #{regression_adopted_nn_forward.1} parent=0 // pred_check
    _
  $region15: #{regression_adopted_nn_forward.1} parent=0 // pred_check_branch
    %21 = sbr.rel (0) target = $region17
  $region16: #{regression_adopted_nn_forward.1} parent=0 // pred_region
    _
  $region17: #{regression_adopted_nn_forward.1} parent=0 // pred_fallthru
    _
  // Predicated region
  $region18: #{regression_adopted_nn_forward.1} parent=0 // pred_check
    _
  $region19: #{regression_adopted_nn_forward.1} parent=0 // pred_check_branch
    %23 = sbr.rel (0) target = $region21
  $region20: #{regression_adopted_nn_forward.1} parent=0 // pred_region
    _
  $region21: #{regression_adopted_nn_forward.1} parent=0 // pred_fallthru
    _
  // Predicated region
  $region22: #{regression_adopted_nn_forward.1} parent=0 // pred_check
    _
  $region23: #{regression_adopted_nn_forward.1} parent=0 // pred_check_branch
    %25 = sbr.rel (0) target = $region25
  $region24: #{regression_adopted_nn_forward.1} parent=0 // pred_region
    _
  $region25: #{regression_adopted_nn_forward.1} parent=0 // pred_fallthru
    _
  // Predicated region
  $region26: #{regression_adopted_nn_forward.1} parent=0 // pred_check
    _
  $region27: #{regression_adopted_nn_forward.1} parent=0 // pred_check_branch
    %27 = sbr.rel (0) target = $region29
  $region28: #{regression_adopted_nn_forward.1} parent=0 // pred_region
    _
  $region29: #{regression_adopted_nn_forward.1} parent=0 // pred_fallthru
    _
  // Predicated region
  $region30: #{regression_adopted_nn_forward.1} parent=0 // pred_check
    _
  $region31: #{regression_adopted_nn_forward.1} parent=0 // pred_check_branch
    %29 = sbr.rel (0) target = $region33
  $region32: #{regression_adopted_nn_forward.1} parent=0 // pred_region
    _
  $region33: #{regression_adopted_nn_forward.1} parent=0 // pred_fallthru
    _
  // Predicated region
  $region34: #{regression_adopted_nn_forward.1} parent=0 // pred_check
    _
  $region35: #{regression_adopted_nn_forward.1} parent=0 // pred_check_branch
    %31 = sbr.rel (0) target = $region37
  $region36: #{regression_adopted_nn_forward.1} parent=0 // pred_region
    _
  $region37: #{regression_adopted_nn_forward.1} parent=0 // pred_fallthru
    _
  %v33 = vld [vmem:[%s0] sm:$0xf]
  %v34 = vld [vmem:[%s0 + $0x4] sm:$0xf]
  %v35 = vld [vmem:[%s0 + $0x8] sm:$0xf]
  %v36 = vld [vmem:[%s0 + $0xc] sm:$0xf]
  %v37 = vld [vmem:[%s0 + $0x10] sm:$0xf]
  %v38 = vld [vmem:[%s0 + $0x14] sm:$0xf]
  %v39 = vld [vmem:[%s0 + $0x18] sm:$0xf]
  %v40 = vld [vmem:[%s0 + $0x1c] sm:$0xf]
  %v41 = vld [vmem:[%s0 + $0x20] sm:$0xf]
  %v42 = vld [vmem:[%s0 + $0x24] sm:$0xf]
  %v43 = vld [vmem:[%s0 + $0x28] sm:$0xf]
  %v44 = vld [vmem:[%s0 + $0x2c] sm:$0xf]
  %v45 = vld [vmem:[%s0 + $0x30] sm:$0xf]
  %v46 = vld [vmem:[%s0 + $0x34] sm:$0xf]
  %v47 = vld [vmem:[%s0 + $0x38] sm:$0xf]
  %v48 = vld [vmem:[%s0 + $0x3c] sm:$0xf]
  %v49 = vld [vmem:[%s0 + $0x40] sm:$0xf]
  %v50 = vld [vmem:[%s0 + $0x44] sm:$0xf]
  %v51 = vld [vmem:[%s0 + $0x48] sm:$0xf]
  %v52 = vld [vmem:[%s0 + $0x4c] sm:$0xf]
  %v53 = vld [vmem:[%s0 + $0x50] sm:$0xf]
  %v54 = vld [vmem:[%s0 + $0x54] sm:$0xf]
  %v55 = vld [vmem:[%s0 + $0x58] sm:$0xf]
  %v56 = vld [vmem:[%s0 + $0x5c] sm:$0xf]
  %v57 = vld [vmem:[%s0 + $0x60] sm:$0xf]
  %v58 = vld [vmem:[%s0 + $0x64] sm:$0xf]
  %v59 = vld [vmem:[%s0 + $0x68] sm:$0xf]
  %v60 = vld [vmem:[%s0 + $0x6c] sm:$0xf]
  %v61 = vld [vmem:[%s0 + $0x70] sm:$0xf]
  %v62 = vld [vmem:[%s0 + $0x74] sm:$0xf]
  %v63 = vld [vmem:[%s0 + $0x78] sm:$0xf]
  %v64 = vld [vmem:[%s0 + $0x7c] sm:$0xf]
  %v65 = vld [vmem:[%s0 + $0x80] sm:$0xf]
  %v66 = vld [vmem:[%s0 + $0x84] sm:$0xf]
  %v67 = vld [vmem:[%s0 + $0x88] sm:$0xf]
  %v68 = vld [vmem:[%s0 + $0x8c] sm:$0xf]
  %v69 = vld [vmem:[%s0 + $0x90] sm:$0xf]
  %v70 = vld [vmem:[%s0 + $0x94] sm:$0xf]
  %v71 = vld [vmem:[%s0 + $0x98] sm:$0xf]
  %v72 = vld [vmem:[%s0 + $0x9c] sm:$0xf]
  %v73 = vld [vmem:[%s0 + $0xa0] sm:$0xf]
  %v74 = vld [vmem:[%s0 + $0xa4] sm:$0xf]
  %v75 = vld [vmem:[%s0 + $0xa8] sm:$0xf]
  %v76 = vld [vmem:[%s0 + $0xac] sm:$0xf]
  %v77 = vld [vmem:[%s0 + $0xb0] sm:$0xf]
  %v78 = vld [vmem:[%s0 + $0xb4] sm:$0xf]
  %v79 = vld [vmem:[%s0 + $0xb8] sm:$0xf]
  %v80 = vld [vmem:[%s0 + $0xbc] sm:$0xf]
  %v81 = vld [vmem:[%s0 + $0xc0] sm:$0xf]
  %v82 = vld [vmem:[%s0 + $0xc4] sm:$0xf]
  %v83 = vld [vmem:[%s0 + $0xc8] sm:$0xf]
  %v84 = vld [vmem:[%s0 + $0xcc] sm:$0xf]
  %v85 = vld [vmem:[%s0 + $0xd0] sm:$0xf]
  %v86 = vld [vmem:[%s0 + $0xd4] sm:$0xf]
  %v87 = vld [vmem:[%s0 + $0xd8] sm:$0xf]
  %v88 = vld [vmem:[%s0 + $0xdc] sm:$0xf]
  %v89 = vld [vmem:[%s0 + $0xe0] sm:$0xf]
  %v90 = vld [vmem:[%s0 + $0xe4] sm:$0xf]
  %v91 = vld [vmem:[%s0 + $0xe8] sm:$0xf]
  %v92 = vld [vmem:[%s0 + $0xec] sm:$0xf]
  %v93 = vld [vmem:[%s0 + $0xf0] sm:$0xf]
  %v94 = vld [vmem:[%s0 + $0xf4] sm:$0xf]
  %v95 = vld [vmem:[%s0 + $0xf8] sm:$0xf]
  %v96 = vld [vmem:[%s0 + $0xfc] sm:$0xf]
  %v97 = vld [vmem:[%s1] sm:$0xf]
  %v98 = vld [vmem:[%s1 + $0x4] sm:$0xf]
  %v99 = vld [vmem:[%s1 + $0x8] sm:$0xf]
  %v100 = vld [vmem:[%s1 + $0xc] sm:$0xf]
  %v101 = vld [vmem:[%s1 + $0x10] sm:$0x3]
  %v102 = vld [vmem:[%s2] sm:$0x1]
  %v104 = vperm.slane %v102, 0
  %v170 = vunpack.c.l.b16 %v33
  %v171 = vunpack.c.l.b16 %v34
  %v172 = vunpack.c.l.b16 %v35
  %v173 = vunpack.c.l.b16 %v36
  %v174 = vunpack.c.l.b16 %v37
  %v175 = vunpack.c.l.b16 %v38
  %v176 = vunpack.c.l.b16 %v39
  %v177 = vunpack.c.l.b16 %v40
  %v178 = vunpack.c.l.b16 %v41
  %v179 = vunpack.c.l.b16 %v42
  %v180 = vunpack.c.l.b16 %v43
  %v181 = vunpack.c.l.b16 %v44
  %v182 = vunpack.c.l.b16 %v45
  %v183 = vunpack.c.l.b16 %v46
  %v184 = vunpack.c.l.b16 %v47
  %v185 = vunpack.c.l.b16 %v48
  %v186 = vunpack.c.l.b16 %v49
  %v187 = vunpack.c.l.b16 %v50
  %v188 = vunpack.c.l.b16 %v51
  %v189 = vunpack.c.l.b16 %v52
  %v190 = vunpack.c.l.b16 %v53
  %v191 = vunpack.c.l.b16 %v54
  %v192 = vunpack.c.l.b16 %v55
  %v193 = vunpack.c.l.b16 %v56
  %v194 = vunpack.c.l.b16 %v57
  %v195 = vunpack.c.l.b16 %v58
  %v196 = vunpack.c.l.b16 %v59
  %v197 = vunpack.c.l.b16 %v60
  %v198 = vunpack.c.l.b16 %v61
  %v199 = vunpack.c.l.b16 %v62
  %v200 = vunpack.c.l.b16 %v63
  %v201 = vunpack.c.l.b16 %v64
  %v202 = vunpack.c.l.b16 %v65
  %v203 = vunpack.c.l.b16 %v66
  %v204 = vunpack.c.l.b16 %v67
  %v205 = vunpack.c.l.b16 %v68
  %v206 = vunpack.c.l.b16 %v69
  %v207 = vunpack.c.l.b16 %v70
  %v208 = vunpack.c.l.b16 %v71
  %v209 = vunpack.c.l.b16 %v72
  %v210 = vunpack.c.l.b16 %v73
  %v211 = vunpack.c.l.b16 %v74
  %v212 = vunpack.c.l.b16 %v75
  %v213 = vunpack.c.l.b16 %v76
  %v214 = vunpack.c.l.b16 %v77
  %v215 = vunpack.c.l.b16 %v78
  %v216 = vunpack.c.l.b16 %v79
  %v217 = vunpack.c.l.b16 %v80
  %v218 = vunpack.c.l.b16 %v81
  %v219 = vunpack.c.l.b16 %v82
  %v220 = vunpack.c.l.b16 %v83
  %v221 = vunpack.c.l.b16 %v84
  %v222 = vunpack.c.l.b16 %v85
  %v223 = vunpack.c.l.b16 %v86
  %v224 = vunpack.c.l.b16 %v87
  %v225 = vunpack.c.l.b16 %v88
  %v226 = vunpack.c.l.b16 %v89
  %v227 = vunpack.c.l.b16 %v90
  %v228 = vunpack.c.l.b16 %v91
  %v229 = vunpack.c.l.b16 %v92
  %v230 = vunpack.c.l.b16 %v93
  %v231 = vunpack.c.l.b16 %v94
  %v232 = vunpack.c.l.b16 %v95
  %v233 = vunpack.c.l.b16 %v96
  %v234 = vpack.c.b16 %v171, %v170
  %v235 = vpack.c.b16 %v173, %v172
  %v236 = vpack.c.b16 %v175, %v174
  %v237 = vpack.c.b16 %v177, %v176
  %v238 = vpack.c.b16 %v179, %v178
  %v239 = vpack.c.b16 %v181, %v180
  %v240 = vpack.c.b16 %v183, %v182
  %v241 = vpack.c.b16 %v185, %v184
  %v242 = vpack.c.b16 %v187, %v186
  %v243 = vpack.c.b16 %v189, %v188
  %v244 = vpack.c.b16 %v191, %v190
  %v245 = vpack.c.b16 %v193, %v192
  %v246 = vpack.c.b16 %v195, %v194
  %v247 = vpack.c.b16 %v197, %v196
  %v248 = vpack.c.b16 %v199, %v198
  %v249 = vpack.c.b16 %v201, %v200
  %v250 = vpack.c.b16 %v203, %v202
  %v251 = vpack.c.b16 %v205, %v204
  %v252 = vpack.c.b16 %v207, %v206
  %v253 = vpack.c.b16 %v209, %v208
  %v254 = vpack.c.b16 %v211, %v210
  %v255 = vpack.c.b16 %v213, %v212
  %v256 = vpack.c.b16 %v215, %v214
  %v257 = vpack.c.b16 %v217, %v216
  %v258 = vpack.c.b16 %v219, %v218
  %v259 = vpack.c.b16 %v221, %v220
  %v260 = vpack.c.b16 %v223, %v222
  %v261 = vpack.c.b16 %v225, %v224
  %v262 = vpack.c.b16 %v227, %v226
  %v263 = vpack.c.b16 %v229, %v228
  %v264 = vpack.c.b16 %v231, %v230
  %v265 = vpack.c.b16 %v233, %v232
  %v271 = vunpack.c.l.b16 %v97
  %v272 = vunpack.c.l.b16 %v98
  %v273 = vunpack.c.l.b16 %v99
  %v274 = vunpack.c.l.b16 %v100
  %v275 = vunpack.c.l.b16 %v101
  %v276 = vpack.c.b16 %v272, %v271
  %v277 = vpack.c.b16 %v274, %v273
  %v278 = vpack.c.b16 %v275, %v275
  %vm281 = vcmask 293888
  %v283 = vsel %vm281, %v234, 0
  %v286 = vsel %vm281, %v235, 0
  %v289 = vsel %vm281, %v236, 0
  %v292 = vsel %vm281, %v237, 0
  %v295 = vsel %vm281, %v238, 0
  %v298 = vsel %vm281, %v239, 0
  %v301 = vsel %vm281, %v240, 0
  %v304 = vsel %vm281, %v241, 0
  %v307 = vsel %vm281, %v242, 0
  %v310 = vsel %vm281, %v243, 0
  %v313 = vsel %vm281, %v244, 0
  %v316 = vsel %vm281, %v245, 0
  %v319 = vsel %vm281, %v246, 0
  %v322 = vsel %vm281, %v247, 0
  %v325 = vsel %vm281, %v248, 0
  %v328 = vsel %vm281, %v249, 0
  %v331 = vsel %vm281, %v250, 0
  %v334 = vsel %vm281, %v251, 0
  %v337 = vsel %vm281, %v252, 0
  %v340 = vsel %vm281, %v253, 0
  %v343 = vsel %vm281, %v254, 0
  %v346 = vsel %vm281, %v255, 0
  %v349 = vsel %vm281, %v256, 0
  %v352 = vsel %vm281, %v257, 0
  %v355 = vsel %vm281, %v258, 0
  %v358 = vsel %vm281, %v259, 0
  %v361 = vsel %vm281, %v260, 0
  %v364 = vsel %vm281, %v261, 0
  %v367 = vsel %vm281, %v262, 0
  %v370 = vsel %vm281, %v263, 0
  %v373 = vsel %vm281, %v264, 0
  %v376 = vsel %vm281, %v265, 0
  %vm378 = vcmask 1041408
  %v380 = vsel %vm378, %v278, 0
  %382 = vmatpush.bf16.msra.mxu0 0
  %383 = vmatpush.bf16.msra.mxu0 0
  %384 = vmatpush.bf16.msra.mxu0 0
  %385 = vmatpush.bf16.msra.mxu0 0
  %386 = vmatpush.bf16.msra.mxu0 0
  %387 = vmatpush.bf16.msra.mxu0 %v380
  %388 = vmatpush.bf16.msra.mxu0 %v277
  %389 = vmatpush.bf16.msra.mxu0 %v276
  %390 = vmatmul.bf16.gmra.mxu0 %v283
  %v391 = vpop.f32.mrf.mxu0
  %v392 = vadd.f32 %v104, %v391
  %v393 = vpop.f32.mrf.mxu0
  %v394 = vadd.f32 %v104, %v393
  %395 = vmatmul.bf16.gmra.mxu0 %v286
  %v396 = vpop.f32.mrf.mxu0
  %v397 = vadd.f32 %v104, %v396
  %v398 = vpop.f32.mrf.mxu0
  %v399 = vadd.f32 %v104, %v398
  %400 = vmatmul.bf16.gmra.mxu0 %v289
  %v401 = vpop.f32.mrf.mxu0
  %v402 = vadd.f32 %v104, %v401
  %v403 = vpop.f32.mrf.mxu0
  %v404 = vadd.f32 %v104, %v403
  %405 = vmatmul.bf16.gmra.mxu0 %v292
  %v406 = vpop.f32.mrf.mxu0
  %v407 = vadd.f32 %v104, %v406
  %v408 = vpop.f32.mrf.mxu0
  %v409 = vadd.f32 %v104, %v408
  %410 = vmatmul.bf16.gmra.mxu0 %v295
  %v411 = vpop.f32.mrf.mxu0
  %v412 = vadd.f32 %v104, %v411
  %v413 = vpop.f32.mrf.mxu0
  %v414 = vadd.f32 %v104, %v413
  %415 = vmatmul.bf16.gmra.mxu0 %v298
  %v416 = vpop.f32.mrf.mxu0
  %v417 = vadd.f32 %v104, %v416
  %v418 = vpop.f32.mrf.mxu0
  %v419 = vadd.f32 %v104, %v418
  %420 = vmatmul.bf16.gmra.mxu0 %v301
  %v421 = vpop.f32.mrf.mxu0
  %v422 = vadd.f32 %v104, %v421
  %v423 = vpop.f32.mrf.mxu0
  %v424 = vadd.f32 %v104, %v423
  %425 = vmatmul.bf16.gmra.mxu0 %v304
  %v426 = vpop.f32.mrf.mxu0
  %v427 = vadd.f32 %v104, %v426
  %v428 = vpop.f32.mrf.mxu0
  %v429 = vadd.f32 %v104, %v428
  %430 = vmatmul.bf16.gmra.mxu0 %v307
  %v431 = vpop.f32.mrf.mxu0
  %v432 = vadd.f32 %v104, %v431
  %v433 = vpop.f32.mrf.mxu0
  %v434 = vadd.f32 %v104, %v433
  %435 = vmatmul.bf16.gmra.mxu0 %v310
  %v436 = vpop.f32.mrf.mxu0
  %v437 = vadd.f32 %v104, %v436
  %v438 = vpop.f32.mrf.mxu0
  %v439 = vadd.f32 %v104, %v438
  %440 = vmatmul.bf16.gmra.mxu0 %v313
  %v441 = vpop.f32.mrf.mxu0
  %v442 = vadd.f32 %v104, %v441
  %v443 = vpop.f32.mrf.mxu0
  %v444 = vadd.f32 %v104, %v443
  %445 = vmatmul.bf16.gmra.mxu0 %v316
  %v446 = vpop.f32.mrf.mxu0
  %v447 = vadd.f32 %v104, %v446
  %v448 = vpop.f32.mrf.mxu0
  %v449 = vadd.f32 %v104, %v448
  %450 = vmatmul.bf16.gmra.mxu0 %v319
  %v451 = vpop.f32.mrf.mxu0
  %v452 = vadd.f32 %v104, %v451
  %v453 = vpop.f32.mrf.mxu0
  %v454 = vadd.f32 %v104, %v453
  %455 = vmatmul.bf16.gmra.mxu0 %v322
  %v456 = vpop.f32.mrf.mxu0
  %v457 = vadd.f32 %v104, %v456
  %v458 = vpop.f32.mrf.mxu0
  %v459 = vadd.f32 %v104, %v458
  %460 = vmatmul.bf16.gmra.mxu0 %v325
  %v461 = vpop.f32.mrf.mxu0
  %v462 = vadd.f32 %v104, %v461
  %v463 = vpop.f32.mrf.mxu0
  %v464 = vadd.f32 %v104, %v463
  %465 = vmatmul.bf16.gmra.mxu0 %v328
  %v466 = vpop.f32.mrf.mxu0
  %v467 = vadd.f32 %v104, %v466
  %v468 = vpop.f32.mrf.mxu0
  %v469 = vadd.f32 %v104, %v468
  %470 = vmatmul.bf16.gmra.mxu0 %v331
  %v471 = vpop.f32.mrf.mxu0
  %v472 = vadd.f32 %v104, %v471
  %v473 = vpop.f32.mrf.mxu0
  %v474 = vadd.f32 %v104, %v473
  %475 = vmatmul.bf16.gmra.mxu0 %v334
  %v476 = vpop.f32.mrf.mxu0
  %v477 = vadd.f32 %v104, %v476
  %v478 = vpop.f32.mrf.mxu0
  %v479 = vadd.f32 %v104, %v478
  %480 = vmatmul.bf16.gmra.mxu0 %v337
  %v481 = vpop.f32.mrf.mxu0
  %v482 = vadd.f32 %v104, %v481
  %v483 = vpop.f32.mrf.mxu0
  %v484 = vadd.f32 %v104, %v483
  %485 = vmatmul.bf16.gmra.mxu0 %v340
  %v486 = vpop.f32.mrf.mxu0
  %v487 = vadd.f32 %v104, %v486
  %v488 = vpop.f32.mrf.mxu0
  %v489 = vadd.f32 %v104, %v488
  %490 = vmatmul.bf16.gmra.mxu0 %v343
  %v491 = vpop.f32.mrf.mxu0
  %v492 = vadd.f32 %v104, %v491
  %v493 = vpop.f32.mrf.mxu0
  %v494 = vadd.f32 %v104, %v493
  %495 = vmatmul.bf16.gmra.mxu0 %v346
  %v496 = vpop.f32.mrf.mxu0
  %v497 = vadd.f32 %v104, %v496
  %v498 = vpop.f32.mrf.mxu0
  %v499 = vadd.f32 %v104, %v498
  %500 = vmatmul.bf16.gmra.mxu0 %v349
  %v501 = vpop.f32.mrf.mxu0
  %v502 = vadd.f32 %v104, %v501
  %v503 = vpop.f32.mrf.mxu0
  %v504 = vadd.f32 %v104, %v503
  %505 = vmatmul.bf16.gmra.mxu0 %v352
  %v506 = vpop.f32.mrf.mxu0
  %v507 = vadd.f32 %v104, %v506
  %v508 = vpop.f32.mrf.mxu0
  %v509 = vadd.f32 %v104, %v508
  %510 = vmatmul.bf16.gmra.mxu0 %v355
  %v511 = vpop.f32.mrf.mxu0
  %v512 = vadd.f32 %v104, %v511
  %v513 = vpop.f32.mrf.mxu0
  %v514 = vadd.f32 %v104, %v513
  %515 = vmatmul.bf16.gmra.mxu0 %v358
  %v516 = vpop.f32.mrf.mxu0
  %v517 = vadd.f32 %v104, %v516
  %v518 = vpop.f32.mrf.mxu0
  %v519 = vadd.f32 %v104, %v518
  %520 = vmatmul.bf16.gmra.mxu0 %v361
  %v521 = vpop.f32.mrf.mxu0
  %v522 = vadd.f32 %v104, %v521
  %v523 = vpop.f32.mrf.mxu0
  %v524 = vadd.f32 %v104, %v523
  %525 = vmatmul.bf16.gmra.mxu0 %v364
  %v526 = vpop.f32.mrf.mxu0
  %v527 = vadd.f32 %v104, %v526
  %v528 = vpop.f32.mrf.mxu0
  %v529 = vadd.f32 %v104, %v528
  %530 = vmatmul.bf16.gmra.mxu0 %v367
  %v531 = vpop.f32.mrf.mxu0
  %v532 = vadd.f32 %v104, %v531
  %v533 = vpop.f32.mrf.mxu0
  %v534 = vadd.f32 %v104, %v533
  %535 = vmatmul.bf16.gmra.mxu0 %v370
  %v536 = vpop.f32.mrf.mxu0
  %v537 = vadd.f32 %v104, %v536
  %v538 = vpop.f32.mrf.mxu0
  %v539 = vadd.f32 %v104, %v538
  %540 = vmatmul.bf16.gmra.mxu0 %v373
  %v541 = vpop.f32.mrf.mxu0
  %v542 = vadd.f32 %v104, %v541
  %v543 = vpop.f32.mrf.mxu0
  %v544 = vadd.f32 %v104, %v543
  %545 = vmatmul.bf16.gmra.mxu0 %v376
  %v546 = vpop.f32.mrf.mxu0
  %v547 = vadd.f32 %v104, %v546
  %v548 = vpop.f32.mrf.mxu0
  %v549 = vadd.f32 %v104, %v548
  %550 = vdwg.mxu0
  %v551 = vmax.f32 %v392, 0.0
  %v552 = vmax.f32 %v394, 0.0
  %v553 = vmax.f32 %v397, 0.0
  %v554 = vmax.f32 %v399, 0.0
  %v555 = vmax.f32 %v402, 0.0
  %v556 = vmax.f32 %v404, 0.0
  %v557 = vmax.f32 %v407, 0.0
  %v558 = vmax.f32 %v409, 0.0
  %v559 = vmax.f32 %v412, 0.0
  %v560 = vmax.f32 %v414, 0.0
  %v561 = vmax.f32 %v417, 0.0
  %v562 = vmax.f32 %v419, 0.0
  %v563 = vmax.f32 %v422, 0.0
  %v564 = vmax.f32 %v424, 0.0
  %v565 = vmax.f32 %v427, 0.0
  %v566 = vmax.f32 %v429, 0.0
  %v567 = vmax.f32 %v432, 0.0
  %v568 = vmax.f32 %v434, 0.0
  %v569 = vmax.f32 %v437, 0.0
  %v570 = vmax.f32 %v439, 0.0
  %v571 = vmax.f32 %v442, 0.0
  %v572 = vmax.f32 %v444, 0.0
  %v573 = vmax.f32 %v447, 0.0
  %v574 = vmax.f32 %v449, 0.0
  %v575 = vmax.f32 %v452, 0.0
  %v576 = vmax.f32 %v454, 0.0
  %v577 = vmax.f32 %v457, 0.0
  %v578 = vmax.f32 %v459, 0.0
  %v579 = vmax.f32 %v462, 0.0
  %v580 = vmax.f32 %v464, 0.0
  %v581 = vmax.f32 %v467, 0.0
  %v582 = vmax.f32 %v469, 0.0
  %v583 = vmax.f32 %v472, 0.0
  %v584 = vmax.f32 %v474, 0.0
  %v585 = vmax.f32 %v477, 0.0
  %v586 = vmax.f32 %v479, 0.0
  %v587 = vmax.f32 %v482, 0.0
  %v588 = vmax.f32 %v484, 0.0
  %v589 = vmax.f32 %v487, 0.0
  %v590 = vmax.f32 %v489, 0.0
  %v591 = vmax.f32 %v492, 0.0
  %v592 = vmax.f32 %v494, 0.0
  %v593 = vmax.f32 %v497, 0.0
  %v594 = vmax.f32 %v499, 0.0
  %v595 = vmax.f32 %v502, 0.0
  %v596 = vmax.f32 %v504, 0.0
  %v597 = vmax.f32 %v507, 0.0
  %v598 = vmax.f32 %v509, 0.0
  %v599 = vmax.f32 %v512, 0.0
  %v600 = vmax.f32 %v514, 0.0
  %v601 = vmax.f32 %v517, 0.0
  %v602 = vmax.f32 %v519, 0.0
  %v603 = vmax.f32 %v522, 0.0
  %v604 = vmax.f32 %v524, 0.0
  %v605 = vmax.f32 %v527, 0.0
  %v606 = vmax.f32 %v529, 0.0
  %v607 = vmax.f32 %v532, 0.0
  %v608 = vmax.f32 %v534, 0.0
  %v609 = vmax.f32 %v537, 0.0
  %v610 = vmax.f32 %v539, 0.0
  %v611 = vmax.f32 %v542, 0.0
  %v612 = vmax.f32 %v544, 0.0
  %v613 = vmax.f32 %v547, 0.0
  %v614 = vmax.f32 %v549, 0.0
  %v615 = vadd.f32 %v551, %v552
  %v616 = vadd.f32 %v615, %v553
  %v617 = vadd.f32 %v616, %v554
  %v618 = vadd.f32 %v617, %v555
  %v619 = vadd.f32 %v618, %v556
  %v620 = vadd.f32 %v619, %v557
  %v621 = vadd.f32 %v620, %v558
  %v622 = vadd.f32 %v621, %v559
  %v623 = vadd.f32 %v622, %v560
  %v624 = vadd.f32 %v623, %v561
  %v625 = vadd.f32 %v624, %v562
  %v626 = vadd.f32 %v625, %v563
  %v627 = vadd.f32 %v626, %v564
  %v628 = vadd.f32 %v627, %v565
  %v629 = vadd.f32 %v628, %v566
  %v630 = vadd.f32 %v629, %v567
  %v631 = vadd.f32 %v630, %v568
  %v632 = vadd.f32 %v631, %v569
  %v633 = vadd.f32 %v632, %v570
  %v634 = vadd.f32 %v633, %v571
  %v635 = vadd.f32 %v634, %v572
  %v636 = vadd.f32 %v635, %v573
  %v637 = vadd.f32 %v636, %v574
  %v638 = vadd.f32 %v637, %v575
  %v639 = vadd.f32 %v638, %v576
  %v640 = vadd.f32 %v639, %v577
  %v641 = vadd.f32 %v640, %v578
  %v642 = vadd.f32 %v641, %v579
  %v643 = vadd.f32 %v642, %v580
  %v644 = vadd.f32 %v643, %v581
  %v645 = vadd.f32 %v644, %v582
  %v646 = vrot.slane %v645, 4
  %v647 = vadd.f32 %v645, %v646
  %v648 = vrot.slane %v647, 2
  %v649 = vadd.f32 %v647, %v648
  %v650 = vrot.slane %v649, 1
  %v651 = vadd.f32 %v649, %v650
  %v652 = vadd.f32 %v583, %v584
  %v653 = vadd.f32 %v652, %v585
  %v654 = vadd.f32 %v653, %v586
  %v655 = vadd.f32 %v654, %v587
  %v656 = vadd.f32 %v655, %v588
  %v657 = vadd.f32 %v656, %v589
  %v658 = vadd.f32 %v657, %v590
  %v659 = vadd.f32 %v658, %v591
  %v660 = vadd.f32 %v659, %v592
  %v661 = vadd.f32 %v660, %v593
  %v662 = vadd.f32 %v661, %v594
  %v663 = vadd.f32 %v662, %v595
  %v664 = vadd.f32 %v663, %v596
  %v665 = vadd.f32 %v664, %v597
  %v666 = vadd.f32 %v665, %v598
  %v667 = vadd.f32 %v666, %v599
  %v668 = vadd.f32 %v667, %v600
  %v669 = vadd.f32 %v668, %v601
  %v670 = vadd.f32 %v669, %v602
  %v671 = vadd.f32 %v670, %v603
  %v672 = vadd.f32 %v671, %v604
  %v673 = vadd.f32 %v672, %v605
  %v674 = vadd.f32 %v673, %v606
  %v675 = vadd.f32 %v674, %v607
  %v676 = vadd.f32 %v675, %v608
  %v677 = vadd.f32 %v676, %v609
  %v678 = vadd.f32 %v677, %v610
  %v679 = vadd.f32 %v678, %v611
  %v680 = vadd.f32 %v679, %v612
  %v681 = vadd.f32 %v680, %v613
  %v682 = vadd.f32 %v681, %v614
  %v683 = vrot.slane %v682, 4
  %v684 = vadd.f32 %v682, %v683
  %v685 = vrot.slane %v684, 2
  %v686 = vadd.f32 %v684, %v685
  %v687 = vrot.slane %v686, 1
  %v688 = vadd.f32 %v686, %v687
  %v689 = vmul.f32 %v651, 0.00390625
  %v690 = vmul.f32 %v688, 0.00390625
  %v691 = vld [vmem:[%s3] sm:$0xff]
  %v692 = vld [vmem:[%s3 + $0x8] sm:$0xff]
  %v693 = vld [vmem:[%s3 + $0x10] sm:$0xff]
  %v694 = vld [vmem:[%s3 + $0x18] sm:$0xff]
  %v695 = vld [vmem:[%s3 + $0x20] sm:$0xff]
  %v696 = vld [vmem:[%s3 + $0x28] sm:$0xff]
  %v697 = vld [vmem:[%s3 + $0x30] sm:$0xff]
  %v698 = vld [vmem:[%s3 + $0x38] sm:$0xff]
  %v699 = vld [vmem:[%s3 + $0x40] sm:$0xff]
  %v700 = vld [vmem:[%s3 + $0x48] sm:$0xff]
  %v701 = vld [vmem:[%s3 + $0x50] sm:$0xff]
  %v702 = vld [vmem:[%s3 + $0x58] sm:$0xff]
  %v703 = vld [vmem:[%s3 + $0x60] sm:$0xff]
  %v704 = vld [vmem:[%s3 + $0x68] sm:$0xff]
  %v705 = vld [vmem:[%s3 + $0x70] sm:$0xff]
  %v706 = vld [vmem:[%s3 + $0x78] sm:$0xff]
  %v707 = vld [vmem:[%s4] sm:$0x1]
  %v709 = vperm.slane %v707, 0
  %vm713 = vcmask 1041409
  %v714 = vsel %vm713, %v690, %v689
  %716 = vmatpush.msra.mxu0 %v706
  %717 = vmatpush.msra.mxu0 %v705
  %718 = vmatpush.msra.mxu0 %v704
  %719 = vmatpush.msra.mxu0 %v703
  %720 = vmatpush.msra.mxu0 %v702
  %721 = vmatpush.msra.mxu0 %v701
  %722 = vmatpush.msra.mxu0 %v700
  %723 = vmatpush.msra.mxu0 %v699
  %724 = vmatpush.msra.mxu0 %v698
  %725 = vmatpush.msra.mxu0 %v697
  %726 = vmatpush.msra.mxu0 %v696
  %727 = vmatpush.msra.mxu0 %v695
  %728 = vmatpush.msra.mxu0 %v694
  %729 = vmatpush.msra.mxu0 %v693
  %730 = vmatpush.msra.mxu0 %v692
  %731 = vmatpush.msra.mxu0 %v691
  %732 = vmatmul.f32.gmra.mxu0 %v714
  %v733 = vpop.f32.mrf.mxu0
  %v734 = vadd.f32 %v709, %v733
  %735 = vdwg.mxu0
  %v736 = vmax.f32 %v734, 0.0
  %v737 = vld [vmem:[%s5] sm:$0xff]
  %v738 = vld [vmem:[%s5 + $0x8] sm:$0xff]
  %v739 = vld [vmem:[%s5 + $0x10] sm:$0xff]
  %v740 = vld [vmem:[%s5 + $0x18] sm:$0xff]
  %v741 = vld [vmem:[%s5 + $0x20] sm:$0xff]
  %v742 = vld [vmem:[%s5 + $0x28] sm:$0xff]
  %v743 = vld [vmem:[%s5 + $0x30] sm:$0xff]
  %v744 = vld [vmem:[%s5 + $0x38] sm:$0xff]
  %v745 = vld [vmem:[%s5 + $0x40] sm:$0xff]
  %v746 = vld [vmem:[%s5 + $0x48] sm:$0xff]
  %v747 = vld [vmem:[%s5 + $0x50] sm:$0xff]
  %v748 = vld [vmem:[%s5 + $0x58] sm:$0xff]
  %v749 = vld [vmem:[%s5 + $0x60] sm:$0xff]
  %v750 = vld [vmem:[%s5 + $0x68] sm:$0xff]
  %v751 = vld [vmem:[%s5 + $0x70] sm:$0xff]
  %v752 = vld [vmem:[%s5 + $0x78] sm:$0xff]
  %v753 = vld [vmem:[%s6] sm:$0x1]
  %v755 = vperm.slane %v753, 0
  %757 = vmatpush.msra.mxu0 %v752
  %758 = vmatpush.msra.mxu0 %v751
  %759 = vmatpush.msra.mxu0 %v750
  %760 = vmatpush.msra.mxu0 %v749
  %761 = vmatpush.msra.mxu0 %v748
  %762 = vmatpush.msra.mxu0 %v747
  %763 = vmatpush.msra.mxu0 %v746
  %764 = vmatpush.msra.mxu0 %v745
  %765 = vmatpush.msra.mxu0 %v744
  %766 = vmatpush.msra.mxu0 %v743
  %767 = vmatpush.msra.mxu0 %v742
  %768 = vmatpush.msra.mxu0 %v741
  %769 = vmatpush.msra.mxu0 %v740
  %770 = vmatpush.msra.mxu0 %v739
  %771 = vmatpush.msra.mxu0 %v738
  %772 = vmatpush.msra.mxu0 %v737
  %773 = vmatmul.f32.gmra.mxu0 %v736
  %v774 = vpop.f32.mrf.mxu0
  %v775 = vadd.f32 %v755, %v774
  %776 = vdwg.mxu0
  %v777 = vmax.f32 %v775, 0.0
  %v778 = vld [vmem:[%s7] sm:$0xff]
  %v779 = vld [vmem:[%s7 + $0x8] sm:$0xff]
  %v780 = vld [vmem:[%s7 + $0x10] sm:$0xff]
  %v781 = vld [vmem:[%s7 + $0x18] sm:$0xff]
  %v782 = vld [vmem:[%s7 + $0x20] sm:$0xff]
  %v783 = vld [vmem:[%s7 + $0x28] sm:$0xff]
  %v784 = vld [vmem:[%s7 + $0x30] sm:$0xff]
  %v785 = vld [vmem:[%s7 + $0x38] sm:$0xff]
  %v786 = vld [vmem:[%s7 + $0x40] sm:$0xff]
  %v787 = vld [vmem:[%s7 + $0x48] sm:$0xff]
  %v788 = vld [vmem:[%s7 + $0x50] sm:$0xff]
  %v789 = vld [vmem:[%s7 + $0x58] sm:$0xff]
  %v790 = vld [vmem:[%s7 + $0x60] sm:$0xff]
  %v791 = vld [vmem:[%s7 + $0x68] sm:$0xff]
  %v792 = vld [vmem:[%s7 + $0x70] sm:$0xff]
  %v793 = vld [vmem:[%s7 + $0x78] sm:$0xff]
  %v794 = vld [vmem:[%s8] sm:$0x1]
  %v796 = vperm.slane %v794, 0
  %798 = vmatpush.msra.mxu0 %v793
  %799 = vmatpush.msra.mxu0 %v792
  %800 = vmatpush.msra.mxu0 %v791
  %801 = vmatpush.msra.mxu0 %v790
  %802 = vmatpush.msra.mxu0 %v789
  %803 = vmatpush.msra.mxu0 %v788
  %804 = vmatpush.msra.mxu0 %v787
  %805 = vmatpush.msra.mxu0 %v786
  %806 = vmatpush.msra.mxu0 %v785
  %807 = vmatpush.msra.mxu0 %v784
  %808 = vmatpush.msra.mxu0 %v783
  %809 = vmatpush.msra.mxu0 %v782
  %810 = vmatpush.msra.mxu0 %v781
  %811 = vmatpush.msra.mxu0 %v780
  %812 = vmatpush.msra.mxu0 %v779
  %813 = vmatpush.msra.mxu0 %v778
  %814 = vmatmul.f32.gmra.mxu0 %v777
  %v815 = vpop.f32.mrf.mxu0
  %v816 = vadd.f32 %v796, %v815
  %817 = vdwg.mxu0
  %818 = vst [vmem:[%s9] sm:$0x3] %v816
  // Predicated region
  $region38: #{regression_adopted_nn_forward.1} parent=0 // pred_check
    _
  $region39: #{regression_adopted_nn_forward.1} parent=0 // pred_check_branch
    %820 = sbr.rel (0) target = $region41
  $region40: #{regression_adopted_nn_forward.1} parent=0 // pred_region
    _
  $region41: #{regression_adopted_nn_forward.1} parent=0 // pred_fallthru
    _
  // Predicated region
  $region42: #{regression_adopted_nn_forward.1} parent=0 // pred_check
    _
  $region43: #{regression_adopted_nn_forward.1} parent=0 // pred_check_branch
    %822 = sbr.rel (0) target = $region45
  $region44: #{regression_adopted_nn_forward.1} parent=0 // pred_region
    _
  $region45: #{regression_adopted_nn_forward.1} parent=0 // pred_fallthru
    _

</llo_original>
